<compile_context>
chip_gen: v7x
topology: tpu7x:2x2x1
jax: 0.10.0
libtpu: 0.0.40
codegen_flags: <defaults>
</compile_context>

<pallas_src>
import functools
import math

import jax
import jax.numpy as jnp
from jax import lax
from jax.experimental import pallas as pl
from jax.experimental.pallas import tpu as pltpu


_VMEM_CAP = 40 * 2**20     # conservative: headroom on v7x (64 MiB/core); v5e/v6e have 128 MiB
_VMEM_FLOOR = 16 * 2**20


# --------------------------------------------------------------------------- #
# Kernels
# --------------------------------------------------------------------------- #
def _qkv_proj_kernel(x_ref, wq_ref, wk_ref, wv_ref, bq_ref, bk_ref, bv_ref,
                     q_ref, k_ref, v_ref):
    """Fused Q/K/V projection for one row tile of x.

    Grid = (row_tile,).  Weights/biases have constant index_maps (fetched once,
    VMEM-resident).  The 1/sqrt(d) attention scale is pre-folded into wq/bq.
    """
    x = x_ref[...]                                                  # (TR, H)
    q = jnp.dot(x, wq_ref[...], preferred_element_type=jnp.float32) + bq_ref[...]
    k = jnp.dot(x, wk_ref[...], preferred_element_type=jnp.float32) + bk_ref[...]
    v = jnp.dot(x, wv_ref[...], preferred_element_type=jnp.float32) + bv_ref[...]
    q_ref[...] = q.astype(q_ref.dtype)
    k_ref[...] = k.astype(k_ref.dtype)
    v_ref[...] = v.astype(v_ref.dtype)


def _out_proj_kernel(x_ref, w_ref, b_ref, o_ref):
    """Output projection out = ctx @ Wo + bo with full H-deep contraction."""
    y = jnp.dot(x_ref[...], w_ref[...], preferred_element_type=jnp.float32) + b_ref[...]
    o_ref[...] = y.astype(o_ref.dtype)


def _attn_kernel(q_ref, k_ref, v_ref, ctx_ref, wts_ref, *, head_dim):
    """Softmax attention for one (batch, head-group, q-tile) grid point.

    q_ref  : (1, TQ, GD)     query rows, GD = G*head_dim lanes (G whole heads)
    k_ref  : (1, S,  GD)     keys for the same heads (resident across q tiles)
    v_ref  : (1, S,  GD)     values
    ctx_ref: (1, TQ, GD)     per-head context, written into the (B,S,H) layout
    wts_ref: (1, G, TQ, S)   attention probabilities for the G heads
    """
    G = q_ref.shape[-1] // head_dim
    mm = q_ref.dtype                       # MXU operand dtype (bf16 or f32)

    for g in range(G):                     # static unroll over heads in the group
        sl = pl.ds(g * head_dim, head_dim)
        qg = q_ref[0, :, sl]               # (TQ, d), already scaled by 1/sqrt(d)
        kg = k_ref[0, :, sl]               # (S, d)
        vg = v_ref[0, :, sl]               # (S, d)

        # Scores: contract on head_dim directly (no K^T / XLU relayout).
        s = lax.dot_general(qg, kg, (((1,), (1,)), ((), ())),
                            preferred_element_type=jnp.float32)    # (TQ, S)

        # Softmax in f32.  Exact reciprocal: the probabilities are a
        # user-visible output, so rows must sum to 1 up to f32 rounding.
        m = jnp.max(s, axis=-1, keepdims=True)
        e = jnp.exp(s - m)
        inv = 1.0 / jnp.sum(e, axis=-1, keepdims=True)
        probs = e * inv                                             # (TQ, S) f32

        # attn_dropout is identity in eval mode.
        wts_ref[0, g] = probs.astype(wts_ref.dtype)

        ctx = jnp.dot(probs.astype(mm), vg,
                      preferred_element_type=jnp.float32)           # (TQ, d)
        ctx_ref[0, :, sl] = ctx.astype(ctx_ref.dtype)


# --------------------------------------------------------------------------- #
# Tiling / VMEM helpers
# --------------------------------------------------------------------------- #
def _pick_tile(n, candidates, fits=None):
    for c in candidates:
        if n % c == 0 and (fits is None or fits(c)):
            return c
    return n


def _head_group_width(H, d):
    """Lanes per attention grid step: whole heads, 128-aligned (or == H)."""
    if H <= 256:
        return H
    for cand in (256, 128):   # 256 targets the v6e/v7x MXU; also valid on v5e
        if H % cand == 0 and cand % d == 0:
            return cand
    return H


def _proj_vmem_bytes(TR, H, n_out, esz):
    blocks = 2 * TR * H * esz                        # x tile (double buffered)
    blocks += 2 * n_out * TR * H * esz               # output tiles
    blocks += 2 * n_out * (H * H * esz + H * 4)      # resident weights + f32 biases
    temps = n_out * TR * H * 4                       # f32 matmul results
    return blocks + temps


def _attn_vmem_bytes(TQ, S, GD, esz, wsz):
    blocks = 2 * TQ * GD * esz                       # q tile
    blocks += 2 * 2 * S * GD * esz                   # k, v (full sequence)
    blocks += 2 * TQ * GD * esz                      # ctx out
    blocks += 2 * TQ * S * wsz                       # probs out
    temps = 4 * TQ * S * 4                           # f32 scores/exp/probs temps
    temps += (TQ + 2 * S) * GD * esz                 # per-head slices
    return blocks + temps


def _vmem_limit(nbytes):
    return int(min(_VMEM_CAP, max(_VMEM_FLOOR, 1.25 * nbytes)))


# --------------------------------------------------------------------------- #
# Forward wrapper
# --------------------------------------------------------------------------- #
def attention_forward(x, params, *, num_heads, q_tile=None, weights_dtype=None):
    """x: (B, S, H).  params: wq,bq,wk,bk,wv,bv,wo,bo with W stored (in, out)."""
    B, S, H = x.shape
    assert H % num_heads == 0
    d = H // num_heads
    dtype = x.dtype
    esz = jnp.dtype(dtype).itemsize
    # NOTE: probabilities default to the input dtype (bf16 in production) to
    # bound the dominant (B,nH,S,S) HBM write; pass weights_dtype=jnp.float32
    # to match the PyTorch module's f32 probabilities exactly.
    wdt = jnp.dtype(weights_dtype) if weights_dtype is not None else jnp.dtype(dtype)
    wsz = wdt.itemsize

    # Fold the 1/sqrt(d) score scale into the query projection (zero runtime cost).
    scale = 1.0 / math.sqrt(d)
    wq = (params["wq"].astype(jnp.float32) * scale).astype(dtype)
    bq = (params["bq"].astype(jnp.float32) * scale).reshape(1, H)
    wk = params["wk"].astype(dtype)
    bk = params["bk"].astype(jnp.float32).reshape(1, H)
    wv = params["wv"].astype(dtype)
    bv = params["bv"].astype(jnp.float32).reshape(1, H)
    wo = params["wo"].astype(dtype)
    bo = params["bo"].astype(jnp.float32).reshape(1, H)

    # ---- 1) fused Q/K/V projection over flattened (B*S) rows ---------------
    BS = B * S
    x2 = x.reshape(BS, H)
    TR = _pick_tile(BS, (512, 256, 128, 64, 32, 16, 8),
                    fits=lambda t: _proj_vmem_bytes(t, H, 3, esz) <= _VMEM_CAP)
    NR = BS // TR

    row_spec = pl.BlockSpec((TR, H), lambda r: (r, 0))
    w_spec = pl.BlockSpec((H, H), lambda r: (0, 0))    # resident (fetched once)
    b_spec = pl.BlockSpec((1, H), lambda r: (0, 0))

    q2, k2, v2 = pl.pallas_call(
        _qkv_proj_kernel,
        out_shape=tuple(jax.ShapeDtypeStruct((BS, H), dtype) for _ in range(3)),
        grid_spec=pltpu.PrefetchScalarGridSpec(
            num_scalar_prefetch=0,
            grid=(NR,),
            in_specs=[row_spec, w_spec, w_spec, w_spec, b_spec, b_spec, b_spec],
            out_specs=[row_spec, row_spec, row_spec],
        ),
        compiler_params=pltpu.CompilerParams(
            dimension_semantics=("parallel",),
            vmem_limit_bytes=_vmem_limit(_proj_vmem_bytes(TR, H, 3, esz)),
        ),
    )(x2, wq, wk, wv, bq, bk, bv)
    q3 = q2.reshape(B, S, H)
    k3 = k2.reshape(B, S, H)
    v3 = v2.reshape(B, S, H)

    # ---- 2) softmax attention: grid (batch, head_group, q_tile) ------------
    GD = _head_group_width(H, d)          # lanes per step = G whole heads
    G = GD // d
    NHG = H // GD
    if q_tile is not None:
        TQ = q_tile
        assert S % TQ == 0
    else:
        TQ = _pick_tile(S, (512, 256, 128, 64, 32, 16, 8),
                        fits=lambda t: _attn_vmem_bytes(t, S, GD, esz, wsz) <= _VMEM_CAP)
    NQ = S // TQ

    attn = functools.partial(_attn_kernel, head_dim=d)
    ctx, wts = pl.pallas_call(
        attn,
        out_shape=(
            jax.ShapeDtypeStruct((B, S, H), dtype),
            jax.ShapeDtypeStruct((B, num_heads, S, S), wdt),
        ),
        grid_spec=pltpu.PrefetchScalarGridSpec(
            num_scalar_prefetch=0,
            grid=(B, NHG, NQ),                 # q-tile innermost: K/V blocks are
            in_specs=[                         # DMA'd once per (batch, head group)
                pl.BlockSpec((1, TQ, GD), lambda b, hg, qi: (b, qi, hg)),
                pl.BlockSpec((1, S, GD), lambda b, hg, qi: (b, 0, hg)),
                pl.BlockSpec((1, S, GD), lambda b, hg, qi: (b, 0, hg)),
            ],
            out_specs=[
                pl.BlockSpec((1, TQ, GD), lambda b, hg, qi: (b, qi, hg)),
                pl.BlockSpec((1, G, TQ, S), lambda b, hg, qi: (b, hg, qi, 0)),
            ],
        ),
        compiler_params=pltpu.CompilerParams(
            dimension_semantics=("parallel", "parallel", "arbitrary"),
            vmem_limit_bytes=_vmem_limit(_attn_vmem_bytes(TQ, S, GD, esz, wsz)),
        ),
    )(q3, k3, v3)

    # ---- 3) output projection (full H-deep contraction, resident Wo) -------
    TRo = _pick_tile(BS, (512, 256, 128, 64, 32, 16, 8),
                     fits=lambda t: _proj_vmem_bytes(t, H, 1, esz) <= _VMEM_CAP)
    NRo = BS // TRo
    rowo_spec = pl.BlockSpec((TRo, H), lambda r: (r, 0))
    out2 = pl.pallas_call(
        _out_proj_kernel,
        out_shape=jax.ShapeDtypeStruct((BS, H), dtype),
        grid_spec=pltpu.PrefetchScalarGridSpec(
            num_scalar_prefetch=0,
            grid=(NRo,),
            in_specs=[rowo_spec,
                      pl.BlockSpec((H, H), lambda r: (0, 0)),
                      pl.BlockSpec((1, H), lambda r: (0, 0))],
            out_specs=rowo_spec,
        ),
        compiler_params=pltpu.CompilerParams(
            dimension_semantics=("parallel",),
            vmem_limit_bytes=_vmem_limit(_proj_vmem_bytes(TRo, H, 1, esz)),
        ),
    )(ctx.reshape(BS, H), wo, bo)
    out = out2.reshape(B, S, H)
    # proj_dropout is identity in eval mode.
    return out, wts


# --------------------------------------------------------------------------- #
# Reference + self-test
# --------------------------------------------------------------------------- #
def _reference(x, params, num_heads):
    """Pure-JAX f32 reference mirroring the PyTorch forward (eval mode)."""
    B, S, H = x.shape
    d = H // num_heads

    def lin(a, w, b):
        return jnp.einsum("bsh,ho->bso", a, w) + b

    q = lin(x, params["wq"], params["bq"]).reshape(B, S, num_heads, d).transpose(0, 2, 1, 3)
    k = lin(x, params["wk"], params["bk"]).reshape(B, S, num_heads, d).transpose(0, 2, 1, 3)
    v = lin(x, params["wv"], params["bv"]).reshape(B, S, num_heads, d).transpose(0, 2, 1, 3)

    scores = jnp.einsum("bhqd,bhkd->bhqk", q, k) / math.sqrt(d)
    probs = jax.nn.softmax(scores, axis=-1)
    ctx = jnp.einsum("bhqk,bhkd->bhqd", probs, v)
    ctx = ctx.transpose(0, 2, 1, 3).reshape(B, S, H)
    out = lin(ctx, params["wo"], params["bo"])
    return out, probs


if __name__ == "__main__":
    B, S, H = 2, 8, 32
    num_heads = 4

    key = jax.random.PRNGKey(0)
    keys = jax.random.split(key, 9)
    wscale = 1.0 / math.sqrt(H)

    params = {
        "wq": jax.random.normal(keys[0], (H, H), jnp.float32) * wscale,
        "bq": jax.random.normal(keys[1], (H,), jnp.float32) * 0.1,
        "wk": jax.random.normal(keys[2], (H, H), jnp.float32) * wscale,
        "bk": jax.random.normal(keys[3], (H,), jnp.float32) * 0.1,
        "wv": jax.random.normal(keys[4], (H, H), jnp.float32) * wscale,
        "bv": jax.random.normal(keys[5], (H,), jnp.float32) * 0.1,
        "wo": jax.random.normal(keys[6], (H, H), jnp.float32) * wscale,
        "bo": jax.random.normal(keys[7], (H,), jnp.float32) * 0.1,
    }
    x = jax.random.normal(keys[8], (B, S, H), jnp.float32)

    # ---- f32 path: tight check against the pure-JAX reference --------------
    out, wts = attention_forward(x, params, num_heads=num_heads)
    out = jax.block_until_ready(out)
    wts = jax.block_until_ready(wts)

    ref_out, ref_wts = _reference(x, params, num_heads)
    assert out.shape == (B, S, H)
    assert wts.shape == (B, num_heads, S, S)
    assert jnp.allclose(out, ref_out, atol=2e-3, rtol=2e-3), "f32 output mismatch"
    assert jnp.allclose(wts, ref_wts, atol=1e-3, rtol=1e-3), "f32 weights mismatch"

    # ---- bf16 path: MXU-friendly operands, loose sanity check --------------
    xb = x.astype(jnp.bfloat16)
    pb = {k: v.astype(jnp.bfloat16) for k, v in params.items()}
    out_b, wts_b = attention_forward(xb, pb, num_heads=num_heads)
    out_b = jax.block_until_ready(out_b)
    wts_b = jax.block_until_ready(wts_b)

    pb32 = {k: v.astype(jnp.float32) for k, v in pb.items()}
    ref_out_b, ref_wts_b = _reference(xb.astype(jnp.float32), pb32, num_heads)
    assert out_b.dtype == jnp.bfloat16 and wts_b.dtype == jnp.bfloat16
    assert jnp.allclose(out_b.astype(jnp.float32), ref_out_b,
                        atol=1e-1, rtol=1e-1), "bf16 output mismatch"
    assert jnp.allclose(wts_b.astype(jnp.float32), ref_wts_b,
                        atol=5e-2, rtol=5e-2), "bf16 weights mismatch"

    print("KERNEL_OK")
</pallas_src>

<mosaic_0001>
module attributes {stable_mosaic.version = 11 : i64} {
  func.func @_qkv_proj_kernel(%arg0: i32, %arg1: memref<16x32xf32, #tpu.memory_space<vmem>>, %arg2: memref<32x32xf32, #tpu.memory_space<vmem>>, %arg3: memref<32x32xf32, #tpu.memory_space<vmem>>, %arg4: memref<32x32xf32, #tpu.memory_space<vmem>>, %arg5: memref<1x32xf32, #tpu.memory_space<vmem>>, %arg6: memref<1x32xf32, #tpu.memory_space<vmem>>, %arg7: memref<1x32xf32, #tpu.memory_space<vmem>>, %arg8: memref<16x32xf32, #tpu.memory_space<vmem>>, %arg9: memref<16x32xf32, #tpu.memory_space<vmem>>, %arg10: memref<16x32xf32, #tpu.memory_space<vmem>>) attributes {dimension_semantics = [#tpu.dimension_semantics<parallel>], iteration_bounds = array<i64: 1>, scalar_prefetch = 0 : i64, scratch_operands = 0 : i64, tpu.core_type = #tpu.core_type<tc>, window_params = [{transform_indices = @transform_0, window_bounds = array<i64: 16, 32>}, {pipeline_mode = #tpu.pipeline_mode<synchronous>, transform_indices = @transform_1, window_bounds = array<i64: 32, 32>}, {pipeline_mode = #tpu.pipeline_mode<synchronous>, transform_indices = @transform_2, window_bounds = array<i64: 32, 32>}, {pipeline_mode = #tpu.pipeline_mode<synchronous>, transform_indices = @transform_3, window_bounds = array<i64: 32, 32>}, {pipeline_mode = #tpu.pipeline_mode<synchronous>, transform_indices = @transform_4, window_bounds = array<i64: 1, 32>}, {pipeline_mode = #tpu.pipeline_mode<synchronous>, transform_indices = @transform_5, window_bounds = array<i64: 1, 32>}, {pipeline_mode = #tpu.pipeline_mode<synchronous>, transform_indices = @transform_6, window_bounds = array<i64: 1, 32>}, {transform_indices = @transform_7, window_bounds = array<i64: 16, 32>}, {transform_indices = @transform_8, window_bounds = array<i64: 16, 32>}, {transform_indices = @transform_9, window_bounds = array<i64: 16, 32>}]} {
    %c0 = arith.constant 0 : index
    %c0_0 = arith.constant 0 : index
    %0 = vector.load %arg1[%c0, %c0_0] : memref<16x32xf32, #tpu.memory_space<vmem>>, vector<16x32xf32>
    %c0_1 = arith.constant 0 : index
    %c0_2 = arith.constant 0 : index
    %1 = vector.load %arg2[%c0_1, %c0_2] : memref<32x32xf32, #tpu.memory_space<vmem>>, vector<32x32xf32>
    %cst = arith.constant dense<0.000000e+00> : vector<16x32xf32>
    %2 = tpu.matmul %0, %1, %cst {dimension_numbers = #tpu.dot_dimension_numbers<[1], [0], [0], [1], [0, 0, 1, 1], [], []>} : vector<16x32xf32>, vector<32x32xf32>, vector<16x32xf32> -> vector<16x32xf32>
    %c0_3 = arith.constant 0 : index
    %c0_4 = arith.constant 0 : index
    %3 = vector.load %arg5[%c0_3, %c0_4] : memref<1x32xf32, #tpu.memory_space<vmem>>, vector<1x32xf32>
    %4 = vector.broadcast %3 : vector<1x32xf32> to vector<16x32xf32>
    %5 = arith.addf %2, %4 : vector<16x32xf32>
    %c0_5 = arith.constant 0 : index
    %c0_6 = arith.constant 0 : index
    %6 = vector.load %arg3[%c0_5, %c0_6] : memref<32x32xf32, #tpu.memory_space<vmem>>, vector<32x32xf32>
    %cst_7 = arith.constant dense<0.000000e+00> : vector<16x32xf32>
    %7 = tpu.matmul %0, %6, %cst_7 {dimension_numbers = #tpu.dot_dimension_numbers<[1], [0], [0], [1], [0, 0, 1, 1], [], []>} : vector<16x32xf32>, vector<32x32xf32>, vector<16x32xf32> -> vector<16x32xf32>
    %c0_8 = arith.constant 0 : index
    %c0_9 = arith.constant 0 : index
    %8 = vector.load %arg6[%c0_8, %c0_9] : memref<1x32xf32, #tpu.memory_space<vmem>>, vector<1x32xf32>
    %9 = vector.broadcast %8 : vector<1x32xf32> to vector<16x32xf32>
    %10 = arith.addf %7, %9 : vector<16x32xf32>
    %c0_10 = arith.constant 0 : index
    %c0_11 = arith.constant 0 : index
    %11 = vector.load %arg4[%c0_10, %c0_11] : memref<32x32xf32, #tpu.memory_space<vmem>>, vector<32x32xf32>
    %cst_12 = arith.constant dense<0.000000e+00> : vector<16x32xf32>
    %12 = tpu.matmul %0, %11, %cst_12 {dimension_numbers = #tpu.dot_dimension_numbers<[1], [0], [0], [1], [0, 0, 1, 1], [], []>} : vector<16x32xf32>, vector<32x32xf32>, vector<16x32xf32> -> vector<16x32xf32>
    %c0_13 = arith.constant 0 : index
    %c0_14 = arith.constant 0 : index
    %13 = vector.load %arg7[%c0_13, %c0_14] : memref<1x32xf32, #tpu.memory_space<vmem>>, vector<1x32xf32>
    %14 = vector.broadcast %13 : vector<1x32xf32> to vector<16x32xf32>
    %15 = arith.addf %12, %14 : vector<16x32xf32>
    %c0_15 = arith.constant 0 : index
    %c0_16 = arith.constant 0 : index
    %16 = vector.load %arg8[%c0_15, %c0_16] : memref<16x32xf32, #tpu.memory_space<vmem>>, vector<16x32xf32>
    tpu.vector_store %arg8[%c0_15, %c0_16], %5 {strides = array<i32>} : memref<16x32xf32, #tpu.memory_space<vmem>>, vector<16x32xf32>,
    %c0_17 = arith.constant 0 : index
    %c0_18 = arith.constant 0 : index
    %17 = vector.load %arg9[%c0_17, %c0_18] : memref<16x32xf32, #tpu.memory_space<vmem>>, vector<16x32xf32>
    tpu.vector_store %arg9[%c0_17, %c0_18], %10 {strides = array<i32>} : memref<16x32xf32, #tpu.memory_space<vmem>>, vector<16x32xf32>,
    %c0_19 = arith.constant 0 : index
    %c0_20 = arith.constant 0 : index
    %18 = vector.load %arg10[%c0_19, %c0_20] : memref<16x32xf32, #tpu.memory_space<vmem>>, vector<16x32xf32>
    tpu.vector_store %arg10[%c0_19, %c0_20], %15 {strides = array<i32>} : memref<16x32xf32, #tpu.memory_space<vmem>>, vector<16x32xf32>,
    return
  }
  func.func @transform_0(%arg0: i32) -> (i32, i32) {
    %c0_i32 = arith.constant 0 : i32
    %c0_i32_0 = arith.constant 0 : i32
    return %arg0, %c0_i32 : i32, i32
  }
  func.func @transform_1(%arg0: i32) -> (i32, i32) {
    %c0_i32 = arith.constant 0 : i32
    %c0_i32_0 = arith.constant 0 : i32
    %c0_i32_1 = arith.constant 0 : i32
    return %c0_i32, %c0_i32_0 : i32, i32
  }
  func.func @transform_2(%arg0: i32) -> (i32, i32) {
    %c0_i32 = arith.constant 0 : i32
    %c0_i32_0 = arith.constant 0 : i32
    %c0_i32_1 = arith.constant 0 : i32
    return %c0_i32, %c0_i32_0 : i32, i32
  }
  func.func @transform_3(%arg0: i32) -> (i32, i32) {
    %c0_i32 = arith.constant 0 : i32
    %c0_i32_0 = arith.constant 0 : i32
    %c0_i32_1 = arith.constant 0 : i32
    return %c0_i32, %c0_i32_0 : i32, i32
  }
  func.func @transform_4(%arg0: i32) -> (i32, i32) {
    %c0_i32 = arith.constant 0 : i32
    %c0_i32_0 = arith.constant 0 : i32
    %c0_i32_1 = arith.constant 0 : i32
    return %c0_i32, %c0_i32_0 : i32, i32
  }
  func.func @transform_5(%arg0: i32) -> (i32, i32) {
    %c0_i32 = arith.constant 0 : i32
    %c0_i32_0 = arith.constant 0 : i32
    %c0_i32_1 = arith.constant 0 : i32
    return %c0_i32, %c0_i32_0 : i32, i32
  }
  func.func @transform_6(%arg0: i32) -> (i32, i32) {
    %c0_i32 = arith.constant 0 : i32
    %c0_i32_0 = arith.constant 0 : i32
    %c0_i32_1 = arith.constant 0 : i32
    return %c0_i32, %c0_i32_0 : i32, i32
  }
  func.func @transform_7(%arg0: i32) -> (i32, i32) {
    %c0_i32 = arith.constant 0 : i32
    %c0_i32_0 = arith.constant 0 : i32
    return %arg0, %c0_i32 : i32, i32
  }
  func.func @transform_8(%arg0: i32) -> (i32, i32) {
    %c0_i32 = arith.constant 0 : i32
    %c0_i32_0 = arith.constant 0 : i32
    return %arg0, %c0_i32 : i32, i32
  }
  func.func @transform_9(%arg0: i32) -> (i32, i32) {
    %c0_i32 = arith.constant 0 : i32
    %c0_i32_0 = arith.constant 0 : i32
    return %arg0, %c0_i32 : i32, i32
  }
}

</mosaic_0001>

<llo_original>
// kernel: tpu_custom_call.1
$region0: #{tpu_custom_call.1}
  #allocation0 [shape = 'u32[]', space=smem, size = 0x4, offset = 0x4, fixed_abs, tag = 'smem constant byte address 0x4 - core index']
  #allocation1 [shape = 'u32[144,128]{1,0:T(1,128)}', space=vmem, size = 0x12000, scoped, tag = 'internal scratch']
  %s0 = inlined_call_operand.hbm [shape: f32[16,32], index: 0, kind: input, shape index: {}]
  %s1 = inlined_call_operand.hbm [shape: f32[32,32], index: 1, kind: input, shape index: {}]
  %s2 = inlined_call_operand.hbm [shape: f32[32,32], index: 2, kind: input, shape index: {}]
  %s3 = inlined_call_operand.hbm [shape: f32[32,32], index: 3, kind: input, shape index: {}]
  %s4 = inlined_call_operand.vmem [shape: f32[1,32], index: 4, kind: input, shape index: {}]
  %s5 = inlined_call_operand.vmem [shape: f32[1,32], index: 5, kind: input, shape index: {}]
  %s6 = inlined_call_operand.vmem [shape: f32[1,32], index: 6, kind: input, shape index: {}]
  %s7 = inlined_call_operand.hbm [shape: f32[16,32], index: 7, kind: output, shape index: {0}]
  %s8 = inlined_call_operand.hbm [shape: f32[16,32], index: 8, kind: output, shape index: {1}]
  %s9 = inlined_call_operand.hbm [shape: f32[16,32], index: 9, kind: output, shape index: {2}]
  %10 = xla_tuple %s7, %s8, %s9
  %s11 = sld [smem:[#allocation0]]
  $region70: #{tpu_custom_call.1} parent=0
    _
  %s13 = ssub.s32 1, %s11
  %s14 = scalar_select 0, %s13, %s11
  $region1: #{tpu_custom_call.1} parent=0
    #allocation2 [shape = 'u8[8192]{0}', space=vmem, size = 0x2000, scoped, tag = 'input window, operand 0, single buffered']
    #allocation3 [shape = 's32[1]{0}', space=sflag, size = 0x4, scoped, tag = 'scoped memory for tpu_custom_call.1']
    #allocation4 [shape = 's32[1]{0}', space=sflag, size = 0x4, scoped, tag = 'scoped memory for tpu_custom_call.1']
    #allocation5 [shape = 'u8[16384]{0}', space=vmem, size = 0x4000, scoped, tag = 'input window, operand 1, single buffered']
    #allocation6 [shape = 's32[1]{0}', space=sflag, size = 0x4, scoped, tag = 'scoped memory for tpu_custom_call.1']
    #allocation7 [shape = 'u8[16384]{0}', space=vmem, size = 0x4000, scoped, tag = 'input window, operand 2, single buffered']
    #allocation8 [shape = 'u8[16384]{0}', space=vmem, size = 0x4000, scoped, tag = 'input window, operand 3, single buffered']
    #allocation9 [shape = 's32[1]{0}', space=sflag, size = 0x4, scoped, tag = 'scoped memory for tpu_custom_call.1']
    #allocation10 [shape = 'u8[8192]{0}', space=vmem, size = 0x2000, scoped, tag = 'output window, operand 0, single buffered']
    #allocation11 [shape = 'u8[8192]{0}', space=vmem, size = 0x2000, scoped, tag = 'output window, operand 1, single buffered']
    #allocation12 [shape = 's32[1]{0}', space=sflag, size = 0x4, scoped, tag = 'scoped memory for tpu_custom_call.1']
    #allocation13 [shape = 'u8[8192]{0}', space=vmem, size = 0x2000, scoped, tag = 'output window, operand 2, single buffered']
    %15 = vsyncpa [#allocation3], 0
    %16 = vsyncpa [#allocation6], 0
    %17 = vsyncpa [#allocation9], 0
    %18 = vsyncpa [#allocation4], 0
    %19 = vsyncpa [#allocation12], 0
    // Predicated region
    $region2: #{tpu_custom_call.1} parent=1 // pred_check
      _
    $region3: #{tpu_custom_call.1} parent=1 // pred_check_branch
      %21 = sbr.rel (0) target = $region5
    $region4: #{tpu_custom_call.1} parent=1 // pred_region
      %s23 = ssub.s32 256, 256
      %24 = vsyncadd [#allocation3], %s23
      %s25 = sshll.u32 [#allocation2], 4
      %s26 = int_to_ptr.vmem [resolvable:$true] %s25
      %31 = dma.hbm_to_vmem [thread:$0]  %s0, 256, %s26, [#allocation3], 128, 128, 8
    $region5: #{tpu_custom_call.1} parent=1 // pred_fallthru
      _
    // Predicated region
    $region6: #{tpu_custom_call.1} parent=1 // pred_check
      _
    $region7: #{tpu_custom_call.1} parent=1 // pred_check_branch
      %33 = sbr.rel (0) target = $region9
    $region8: #{tpu_custom_call.1} parent=1 // pred_region
      %s35 = ssub.s32 512, 512
      %36 = vsyncadd [#allocation6], %s35
      %s37 = sshll.u32 [#allocation5], 4
      %s38 = int_to_ptr.vmem [resolvable:$true] %s37
      %43 = dma.hbm_to_vmem [thread:$0]  %s1, 512, %s38, [#allocation6], 128, 128, 8
    $region9: #{tpu_custom_call.1} parent=1 // pred_fallthru
      _
    // Predicated region
    $region10: #{tpu_custom_call.1} parent=1 // pred_check
      _
    $region11: #{tpu_custom_call.1} parent=1 // pred_check_branch
      %45 = sbr.rel (0) target = $region13
    $region12: #{tpu_custom_call.1} parent=1 // pred_region
      %s47 = ssub.s32 512, 512
      %48 = vsyncadd [#allocation6], %s47
      %s49 = sshll.u32 [#allocation7], 4
      %s50 = int_to_ptr.vmem [resolvable:$true] %s49
      %55 = dma.hbm_to_vmem [thread:$0]  %s2, 512, %s50, [#allocation6], 128, 128, 8
    $region13: #{tpu_custom_call.1} parent=1 // pred_fallthru
      _
    // Predicated region
    $region14: #{tpu_custom_call.1} parent=1 // pred_check
      _
    $region15: #{tpu_custom_call.1} parent=1 // pred_check_branch
      %57 = sbr.rel (0) target = $region17
    $region16: #{tpu_custom_call.1} parent=1 // pred_region
      %s59 = ssub.s32 512, 512
      %60 = vsyncadd [#allocation9], %s59
      %s61 = sshll.u32 [#allocation8], 4
      %s62 = int_to_ptr.vmem [resolvable:$true] %s61
      %67 = dma.hbm_to_vmem [thread:$0]  %s3, 512, %s62, [#allocation9], 128, 128, 8
    $region17: #{tpu_custom_call.1} parent=1 // pred_fallthru
      _
    // Predicated region
    $region18: #{tpu_custom_call.1} parent=1 // pred_check
      _
    $region19: #{tpu_custom_call.1} parent=1 // pred_check_branch
      %69 = sbr.rel (0) target = $region21
    $region20: #{tpu_custom_call.1} parent=1 // pred_region
      _
    $region21: #{tpu_custom_call.1} parent=1 // pred_fallthru
      _
    // Predicated region
    $region22: #{tpu_custom_call.1} parent=1 // pred_check
      _
    $region23: #{tpu_custom_call.1} parent=1 // pred_check_branch
      %71 = sbr.rel (0) target = $region25
    $region24: #{tpu_custom_call.1} parent=1 // pred_region
      _
    $region25: #{tpu_custom_call.1} parent=1 // pred_fallthru
      _
    // Predicated region
    $region26: #{tpu_custom_call.1} parent=1 // pred_check
      _
    $region27: #{tpu_custom_call.1} parent=1 // pred_check_branch
      %73 = sbr.rel (0) target = $region29
    $region28: #{tpu_custom_call.1} parent=1 // pred_region
      _
    $region29: #{tpu_custom_call.1} parent=1 // pred_fallthru
      _
    // Predicated region
    $region30: #{tpu_custom_call.1} parent=1 // pred_check
      _
    $region31: #{tpu_custom_call.1} parent=1 // pred_check_branch
      %75 = sbr.rel (0) target = $region33
    $region32: #{tpu_custom_call.1} parent=1 // pred_region
      %76 = dma.done [#allocation3], 256
    $region33: #{tpu_custom_call.1} parent=1 // pred_fallthru
      _
    // Predicated region
    $region34: #{tpu_custom_call.1} parent=1 // pred_check
      _
    $region35: #{tpu_custom_call.1} parent=1 // pred_check_branch
      %78 = sbr.rel (0) target = $region37
    $region36: #{tpu_custom_call.1} parent=1 // pred_region
      %79 = dma.done [#allocation6], 512
    $region37: #{tpu_custom_call.1} parent=1 // pred_fallthru
      _
    // Predicated region
    $region38: #{tpu_custom_call.1} parent=1 // pred_check
      _
    $region39: #{tpu_custom_call.1} parent=1 // pred_check_branch
      %81 = sbr.rel (0) target = $region41
    $region40: #{tpu_custom_call.1} parent=1 // pred_region
      %82 = dma.done [#allocation6], 512
    $region41: #{tpu_custom_call.1} parent=1 // pred_fallthru
      _
    // Predicated region
    $region42: #{tpu_custom_call.1} parent=1 // pred_check
      _
    $region43: #{tpu_custom_call.1} parent=1 // pred_check_branch
      %84 = sbr.rel (0) target = $region45
    $region44: #{tpu_custom_call.1} parent=1 // pred_region
      %85 = dma.done [#allocation9], 512
    $region45: #{tpu_custom_call.1} parent=1 // pred_fallthru
      _
    %v86 = vld [vmem:[#allocation2] sm:$0xff]
    %v87 = vld [vmem:[#allocation2 + $0x8] sm:$0xff]
    %v88 = vld [vmem:[#allocation5] sm:$0xff]
    %v89 = vld [vmem:[#allocation5 + $0x8] sm:$0xff]
    %v90 = vld [vmem:[#allocation5 + $0x10] sm:$0xff]
    %v91 = vld [vmem:[#allocation5 + $0x18] sm:$0xff]
    %v92 = vld [vmem:[%s4] sm:$0x1]
    %v94 = vlaneseq
    %v95 = vshrl.u32 %v94, 7
    %v96 = vsub.s32 0, %v95
    %v97 = vrot.slane %v92, %v96
    %vm99 = vcmask 261120
    %v101 = vsel %vm99, %v86, 0
    %v104 = vsel %vm99, %v87, 0
    %106 = vmatprep.subr.mxu0 0.0
    %107 = vmatpush1.msra.mxu0 %v88
    %108 = vmatprep.subr.mxu0 0.0
    %109 = vmatpush1.msra.mxu0 %v89
    %110 = vmatprep.subr.mxu0 0.0
    %111 = vmatpush1.msra.mxu0 %v90
    %112 = vmatprep.subr.mxu0 0.0
    %113 = vmatpush1.msra.mxu0 %v91
    %114 = vmatprep.subr.mxu0 0.0
    %115 = vmatpush1.msra.mxu0 0.0
    %116 = vmatprep.subr.mxu0 0.0
    %117 = vmatpush1.msra.mxu0 0.0
    %118 = vmatprep.subr.mxu0 0.0
    %119 = vmatpush1.msra.mxu0 0.0
    %120 = vmatprep.subr.mxu0 0.0
    %121 = vmatpush1.msra.mxu0 0.0
    %122 = vmatprep.subr.mxu0 0.0
    %123 = vmatpush1.msra.mxu0 0.0
    %124 = vmatprep.subr.mxu0 0.0
    %125 = vmatpush1.msra.mxu0 0.0
    %126 = vmatprep.subr.mxu0 0.0
    %127 = vmatpush1.msra.mxu0 0.0
    %128 = vmatprep.subr.mxu0 0.0
    %129 = vmatpush1.msra.mxu0 0.0
    %130 = vmatprep.subr.mxu0 0.0
    %131 = vmatpush1.msra.mxu0 0.0
    %132 = vmatprep.subr.mxu0 0.0
    %133 = vmatpush1.msra.mxu0 0.0
    %134 = vmatprep.subr.mxu0 0.0
    %135 = vmatpush1.msra.mxu0 0.0
    %136 = vmatprep.subr.mxu0 0.0
    %137 = vmatpush1.msra.mxu0 0.0
    %138 = vmatprep.subr.mxu0 0.0
    %139 = vmatpush1.msra.mxu0 0.0
    %140 = vmatprep.subr.mxu0 0.0
    %141 = vmatpush1.msra.mxu0 0.0
    %142 = vmatprep.subr.mxu0 0.0
    %143 = vmatpush1.msra.mxu0 0.0
    %144 = vmatprep.subr.mxu0 0.0
    %145 = vmatpush1.msra.mxu0 0.0
    %146 = vmatprep.subr.mxu0 0.0
    %147 = vmatpush1.msra.mxu0 0.0
    %148 = vmatprep.subr.mxu0 0.0
    %149 = vmatpush1.msra.mxu0 0.0
    %150 = vmatprep.subr.mxu0 0.0
    %151 = vmatpush1.msra.mxu0 0.0
    %152 = vmatprep.subr.mxu0 0.0
    %153 = vmatpush1.msra.mxu0 0.0
    %154 = vmatprep.subr.mxu0 0.0
    %155 = vmatpush1.msra.mxu0 0.0
    %156 = vmatprep.subr.mxu0 0.0
    %157 = vmatpush1.msra.mxu0 0.0
    %158 = vmatprep.subr.mxu0 0.0
    %159 = vmatpush1.msra.mxu0 0.0
    %160 = vmatprep.subr.mxu0 0.0
    %161 = vmatpush1.msra.mxu0 0.0
    %162 = vmatprep.subr.mxu0 0.0
    %163 = vmatpush1.msra.mxu0 0.0
    %164 = vmatprep.subr.mxu0 0.0
    %165 = vmatpush1.msra.mxu0 0.0
    %166 = vmatprep.subr.mxu0 0.0
    %167 = vmatpush1.msra.mxu0 0.0
    %168 = vmatprep.subr.mxu0 0.0
    %169 = vmatpush1.msra.mxu0 0.0
    %170 = vmatprep.mubr.f32.mxu0 0.0
    %171 = vmatmul.mubr.f32.gmra.mrb[0].mxu0 %v101
    %v172 = vpop.f32.mrb[0].mxu0
    %v173 = vadd.f32 %v97, %v172
    %v174 = vpop.f32.mrb[0].mxu0
    %175 = vmatprep.mubr.f32.mxu0 0.0
    %176 = vmatmul.mubr.f32.gmra.mrb[0].mxu0 %v104
    %v177 = vpop.f32.mrb[0].mxu0
    %v178 = vadd.f32 %v97, %v177
    %v179 = vpop.f32.mrb[0].mxu0
    %180 = vdwg.mxu0
    %v181 = vld [vmem:[#allocation7] sm:$0xff]
    %v182 = vld [vmem:[#allocation7 + $0x8] sm:$0xff]
    %v183 = vld [vmem:[#allocation7 + $0x10] sm:$0xff]
    %v184 = vld [vmem:[#allocation7 + $0x18] sm:$0xff]
    %v185 = vld [vmem:[%s5] sm:$0x1]
    %v187 = vlaneseq
    %v188 = vshrl.u32 %v187, 7
    %v189 = vsub.s32 0, %v188
    %v190 = vrot.slane %v185, %v189
    %192 = vmatprep.subr.mxu0 0.0
    %193 = vmatpush1.msra.mxu0 %v181
    %194 = vmatprep.subr.mxu0 0.0
    %195 = vmatpush1.msra.mxu0 %v182
    %196 = vmatprep.subr.mxu0 0.0
    %197 = vmatpush1.msra.mxu0 %v183
    %198 = vmatprep.subr.mxu0 0.0
    %199 = vmatpush1.msra.mxu0 %v184
    %200 = vmatprep.subr.mxu0 0.0
    %201 = vmatpush1.msra.mxu0 0.0
    %202 = vmatprep.subr.mxu0 0.0
    %203 = vmatpush1.msra.mxu0 0.0
    %204 = vmatprep.subr.mxu0 0.0
    %205 = vmatpush1.msra.mxu0 0.0
    %206 = vmatprep.subr.mxu0 0.0
    %207 = vmatpush1.msra.mxu0 0.0
    %208 = vmatprep.subr.mxu0 0.0
    %209 = vmatpush1.msra.mxu0 0.0
    %210 = vmatprep.subr.mxu0 0.0
    %211 = vmatpush1.msra.mxu0 0.0
    %212 = vmatprep.subr.mxu0 0.0
    %213 = vmatpush1.msra.mxu0 0.0
    %214 = vmatprep.subr.mxu0 0.0
    %215 = vmatpush1.msra.mxu0 0.0
    %216 = vmatprep.subr.mxu0 0.0
    %217 = vmatpush1.msra.mxu0 0.0
    %218 = vmatprep.subr.mxu0 0.0
    %219 = vmatpush1.msra.mxu0 0.0
    %220 = vmatprep.subr.mxu0 0.0
    %221 = vmatpush1.msra.mxu0 0.0
    %222 = vmatprep.subr.mxu0 0.0
    %223 = vmatpush1.msra.mxu0 0.0
    %224 = vmatprep.subr.mxu0 0.0
    %225 = vmatpush1.msra.mxu0 0.0
    %226 = vmatprep.subr.mxu0 0.0
    %227 = vmatpush1.msra.mxu0 0.0
    %228 = vmatprep.subr.mxu0 0.0
    %229 = vmatpush1.msra.mxu0 0.0
    %230 = vmatprep.subr.mxu0 0.0
    %231 = vmatpush1.msra.mxu0 0.0
    %232 = vmatprep.subr.mxu0 0.0
    %233 = vmatpush1.msra.mxu0 0.0
    %234 = vmatprep.subr.mxu0 0.0
    %235 = vmatpush1.msra.mxu0 0.0
    %236 = vmatprep.subr.mxu0 0.0
    %237 = vmatpush1.msra.mxu0 0.0
    %238 = vmatprep.subr.mxu0 0.0
    %239 = vmatpush1.msra.mxu0 0.0
    %240 = vmatprep.subr.mxu0 0.0
    %241 = vmatpush1.msra.mxu0 0.0
    %242 = vmatprep.subr.mxu0 0.0
    %243 = vmatpush1.msra.mxu0 0.0
    %244 = vmatprep.subr.mxu0 0.0
    %245 = vmatpush1.msra.mxu0 0.0
    %246 = vmatprep.subr.mxu0 0.0
    %247 = vmatpush1.msra.mxu0 0.0
    %248 = vmatprep.subr.mxu0 0.0
    %249 = vmatpush1.msra.mxu0 0.0
    %250 = vmatprep.subr.mxu0 0.0
    %251 = vmatpush1.msra.mxu0 0.0
    %252 = vmatprep.subr.mxu0 0.0
    %253 = vmatpush1.msra.mxu0 0.0
    %254 = vmatprep.subr.mxu0 0.0
    %255 = vmatpush1.msra.mxu0 0.0
    %256 = vmatprep.mubr.f32.mxu0 0.0
    %257 = vmatmul.mubr.f32.gmra.mrb[0].mxu0 %v101
    %v258 = vpop.f32.mrb[0].mxu0
    %v259 = vadd.f32 %v190, %v258
    %v260 = vpop.f32.mrb[0].mxu0
    %261 = vmatprep.mubr.f32.mxu0 0.0
    %262 = vmatmul.mubr.f32.gmra.mrb[0].mxu0 %v104
    %v263 = vpop.f32.mrb[0].mxu0
    %v264 = vadd.f32 %v190, %v263
    %v265 = vpop.f32.mrb[0].mxu0
    %266 = vdwg.mxu0
    %v267 = vld [vmem:[#allocation8] sm:$0xff]
    %v268 = vld [vmem:[#allocation8 + $0x8] sm:$0xff]
    %v269 = vld [vmem:[#allocation8 + $0x10] sm:$0xff]
    %v270 = vld [vmem:[#allocation8 + $0x18] sm:$0xff]
    %v271 = vld [vmem:[%s6] sm:$0x1]
    %v273 = vlaneseq
    %v274 = vshrl.u32 %v273, 7
    %v275 = vsub.s32 0, %v274
    %v276 = vrot.slane %v271, %v275
    %278 = vmatprep.subr.mxu0 0.0
    %279 = vmatpush1.msra.mxu0 %v267
    %280 = vmatprep.subr.mxu0 0.0
    %281 = vmatpush1.msra.mxu0 %v268
    %282 = vmatprep.subr.mxu0 0.0
    %283 = vmatpush1.msra.mxu0 %v269
    %284 = vmatprep.subr.mxu0 0.0
    %285 = vmatpush1.msra.mxu0 %v270
    %286 = vmatprep.subr.mxu0 0.0
    %287 = vmatpush1.msra.mxu0 0.0
    %288 = vmatprep.subr.mxu0 0.0
    %289 = vmatpush1.msra.mxu0 0.0
    %290 = vmatprep.subr.mxu0 0.0
    %291 = vmatpush1.msra.mxu0 0.0
    %292 = vmatprep.subr.mxu0 0.0
    %293 = vmatpush1.msra.mxu0 0.0
    %294 = vmatprep.subr.mxu0 0.0
    %295 = vmatpush1.msra.mxu0 0.0
    %296 = vmatprep.subr.mxu0 0.0
    %297 = vmatpush1.msra.mxu0 0.0
    %298 = vmatprep.subr.mxu0 0.0
    %299 = vmatpush1.msra.mxu0 0.0
    %300 = vmatprep.subr.mxu0 0.0
    %301 = vmatpush1.msra.mxu0 0.0
    %302 = vmatprep.subr.mxu0 0.0
    %303 = vmatpush1.msra.mxu0 0.0
    %304 = vmatprep.subr.mxu0 0.0
    %305 = vmatpush1.msra.mxu0 0.0
    %306 = vmatprep.subr.mxu0 0.0
    %307 = vmatpush1.msra.mxu0 0.0
    %308 = vmatprep.subr.mxu0 0.0
    %309 = vmatpush1.msra.mxu0 0.0
    %310 = vmatprep.subr.mxu0 0.0
    %311 = vmatpush1.msra.mxu0 0.0
    %312 = vmatprep.subr.mxu0 0.0
    %313 = vmatpush1.msra.mxu0 0.0
    %314 = vmatprep.subr.mxu0 0.0
    %315 = vmatpush1.msra.mxu0 0.0
    %316 = vmatprep.subr.mxu0 0.0
    %317 = vmatpush1.msra.mxu0 0.0
    %318 = vmatprep.subr.mxu0 0.0
    %319 = vmatpush1.msra.mxu0 0.0
    %320 = vmatprep.subr.mxu0 0.0
    %321 = vmatpush1.msra.mxu0 0.0
    %322 = vmatprep.subr.mxu0 0.0
    %323 = vmatpush1.msra.mxu0 0.0
    %324 = vmatprep.subr.mxu0 0.0
    %325 = vmatpush1.msra.mxu0 0.0
    %326 = vmatprep.subr.mxu0 0.0
    %327 = vmatpush1.msra.mxu0 0.0
    %328 = vmatprep.subr.mxu0 0.0
    %329 = vmatpush1.msra.mxu0 0.0
    %330 = vmatprep.subr.mxu0 0.0
    %331 = vmatpush1.msra.mxu0 0.0
    %332 = vmatprep.subr.mxu0 0.0
    %333 = vmatpush1.msra.mxu0 0.0
    %334 = vmatprep.subr.mxu0 0.0
    %335 = vmatpush1.msra.mxu0 0.0
    %336 = vmatprep.subr.mxu0 0.0
    %337 = vmatpush1.msra.mxu0 0.0
    %338 = vmatprep.subr.mxu0 0.0
    %339 = vmatpush1.msra.mxu0 0.0
    %340 = vmatprep.subr.mxu0 0.0
    %341 = vmatpush1.msra.mxu0 0.0
    %342 = vmatprep.mubr.f32.mxu0 0.0
    %343 = vmatmul.mubr.f32.gmra.mrb[0].mxu0 %v101
    %v344 = vpop.f32.mrb[0].mxu0
    %v345 = vadd.f32 %v276, %v344
    %v346 = vpop.f32.mrb[0].mxu0
    %347 = vmatprep.mubr.f32.mxu0 0.0
    %348 = vmatmul.mubr.f32.gmra.mrb[0].mxu0 %v104
    %v349 = vpop.f32.mrb[0].mxu0
    %v350 = vadd.f32 %v276, %v349
    %v351 = vpop.f32.mrb[0].mxu0
    %352 = vdwg.mxu0
    %353 = vst.msk [vmem:[#allocation10] sm:$0xff] %vm99, %v173
    %354 = vst.msk [vmem:[#allocation10 + $0x8] sm:$0xff] %vm99, %v178
    %355 = vst.msk [vmem:[#allocation11] sm:$0xff] %vm99, %v259
    %356 = vst.msk [vmem:[#allocation11 + $0x8] sm:$0xff] %vm99, %v264
    %357 = vst.msk [vmem:[#allocation13] sm:$0xff] %vm99, %v345
    %358 = vst.msk [vmem:[#allocation13 + $0x8] sm:$0xff] %vm99, %v350
    // Predicated region
    $region46: #{tpu_custom_call.1} parent=1 // pred_check
      _
    $region47: #{tpu_custom_call.1} parent=1 // pred_check_branch
      %360 = sbr.rel (0) target = $region49
    $region48: #{tpu_custom_call.1} parent=1 // pred_region
      %s362 = ssub.s32 256, 256
      %363 = vsyncadd [#allocation4], %s362
      %s364 = sshll.u32 [#allocation10], 4
      %s365 = int_to_ptr.vmem [resolvable:$true] %s364
      %370 = dma.vmem_to_hbm [thread:$0]  %s365, 256, %s7, [#allocation4], 128, 128, 8
    $region49: #{tpu_custom_call.1} parent=1 // pred_fallthru
      _
    // Predicated region
    $region50: #{tpu_custom_call.1} parent=1 // pred_check
      _
    $region51: #{tpu_custom_call.1} parent=1 // pred_check_branch
      %372 = sbr.rel (0) target = $region53
    $region52: #{tpu_custom_call.1} parent=1 // pred_region
      %s374 = ssub.s32 256, 256
      %375 = vsyncadd [#allocation12], %s374
      %s376 = sshll.u32 [#allocation11], 4
      %s377 = int_to_ptr.vmem [resolvable:$true] %s376
      %382 = dma.vmem_to_hbm [thread:$0]  %s377, 256, %s8, [#allocation12], 128, 128, 8
    $region53: #{tpu_custom_call.1} parent=1 // pred_fallthru
      _
    // Predicated region
    $region54: #{tpu_custom_call.1} parent=1 // pred_check
      _
    $region55: #{tpu_custom_call.1} parent=1 // pred_check_branch
      %384 = sbr.rel (0) target = $region57
    $region56: #{tpu_custom_call.1} parent=1 // pred_region
      %s386 = ssub.s32 256, 256
      %387 = vsyncadd [#allocation12], %s386
      %s388 = sshll.u32 [#allocation13], 4
      %s389 = int_to_ptr.vmem [resolvable:$true] %s388
      %394 = dma.vmem_to_hbm [thread:$0]  %s389, 256, %s9, [#allocation12], 128, 128, 8
    $region57: #{tpu_custom_call.1} parent=1 // pred_fallthru
      _
    // Predicated region
    $region58: #{tpu_custom_call.1} parent=1 // pred_check
      _
    $region59: #{tpu_custom_call.1} parent=1 // pred_check_branch
      %396 = sbr.rel (0) target = $region61
    $region60: #{tpu_custom_call.1} parent=1 // pred_region
      %397 = dma.done [#allocation4], 256
    $region61: #{tpu_custom_call.1} parent=1 // pred_fallthru
      _
    // Predicated region
    $region62: #{tpu_custom_call.1} parent=1 // pred_check
      _
    $region63: #{tpu_custom_call.1} parent=1 // pred_check_branch
      %399 = sbr.rel (0) target = $region65
    $region64: #{tpu_custom_call.1} parent=1 // pred_region
      %400 = dma.done [#allocation12], 256
    $region65: #{tpu_custom_call.1} parent=1 // pred_fallthru
      _
    // Predicated region
    $region66: #{tpu_custom_call.1} parent=1 // pred_check
      _
    $region67: #{tpu_custom_call.1} parent=1 // pred_check_branch
      %402 = sbr.rel (0) target = $region69
    $region68: #{tpu_custom_call.1} parent=1 // pred_region
      %403 = dma.done [#allocation12], 256
    $region69: #{tpu_custom_call.1} parent=1 // pred_fallthru
      _
    %404 = vsyncpa [#allocation3], 1
    %405 = vsyncpa [#allocation6], 1
    %406 = vsyncpa [#allocation9], 1
    %407 = vsyncpa [#allocation4], 1
    %408 = vsyncpa [#allocation12], 1

</llo_original>
